<compile_context>
chip_gen: v7x
topology: tpu7x:2x2x1
jax: 0.10.0
libtpu: 0.0.40
codegen_flags: <defaults>
</compile_context>

<pallas_src>
import functools

import jax
import jax.numpy as jnp
from jax.experimental import pallas as pl
from jax.experimental.pallas import tpu as pltpu


def _bpr_partial_kernel(pos_ref, neg_ref, out_ref, *, rows):
    """Per-block partial sums of the BPR loss.

    pos_ref / neg_ref : (tile_b, N) VMEM tiles of the scores.
    out_ref           : (1, rows, N) VMEM tile of lane-parallel partial sums.
    """
    pos = pos_ref[...].astype(jnp.float32)
    neg = neg_ref[...].astype(jnp.float32)

    # Stable -log(sigmoid(pos - neg)) == softplus(neg - pos).
    z = neg - pos
    loss = jnp.maximum(z, 0.0) + jnp.log(1.0 + jnp.exp(-jnp.abs(z)))

    tb, n = loss.shape
    # Fold sublane-groups: layout-preserving reshape + leading-axis sum
    # (pure VPU vector adds; the single cross-lane reduce happens outside).
    partial = loss.reshape(tb // rows, rows, n).sum(axis=0)
    out_ref[...] = partial[None]


def _pick_tile_b(batch, n, itemsize, budget_bytes=2 * 1024 * 1024):
    """Largest 8-aligned divisor of `batch` whose (tile_b, n) tile stays under
    `budget_bytes` per input (2 inputs x 2 pipeline buffers ~<= 8 MiB)."""
    cap = max(8, budget_bytes // max(1, n * itemsize))
    if batch <= cap:
        return batch                       # whole batch fits in one block
    d = (min(cap, batch) // 8) * 8
    while d >= 8:
        if batch % d == 0:
            return d
        d -= 8
    return batch                           # no aligned divisor: single block


def bpr_loss(positive_scores, negative_scores):
    """Pallas BPR loss.  Accepts f32/bf16 arrays of any rank; returns scalar."""
    assert positive_scores.shape == negative_scores.shape

    # Collapse to 2-D (rows, lane-dim); the loss is a mean over all elements,
    # so this reshape is semantics-preserving.
    if positive_scores.ndim <= 1:
        pos2 = positive_scores.reshape(1, -1)
        neg2 = negative_scores.reshape(1, -1)
    else:
        pos2 = positive_scores.reshape(-1, positive_scores.shape[-1])
        neg2 = negative_scores.reshape(-1, negative_scores.shape[-1])

    B, N = pos2.shape
    tile_b = _pick_tile_b(B, N, jnp.dtype(pos2.dtype).itemsize)
    num_blocks = B // tile_b
    rows = 8 if tile_b % 8 == 0 else 1

    partials = pl.pallas_call(
        functools.partial(_bpr_partial_kernel, rows=rows),
        out_shape=jax.ShapeDtypeStruct((num_blocks, rows, N), jnp.float32),
        grid_spec=pltpu.PrefetchScalarGridSpec(
            num_scalar_prefetch=0,
            grid=(num_blocks,),
            in_specs=[
                pl.BlockSpec((tile_b, N), lambda i: (i, 0)),
                pl.BlockSpec((tile_b, N), lambda i: (i, 0)),
            ],
            out_specs=pl.BlockSpec((1, rows, N), lambda i: (i, 0, 0)),
        ),
        compiler_params=pltpu.CompilerParams(
            dimension_semantics=("parallel",),      # megacore-friendly (v7x)
            vmem_limit_bytes=32 * 1024 * 1024,      # headroom for big tiles
        ),
    )(pos2, neg2)

    # Tiny final reduction + exact (integer) element count outside the kernel.
    total = jnp.sum(partials, dtype=jnp.float32)
    return total / (B * N)


def bpr_loss_ref(positive_scores, negative_scores):
    """Pure-JAX reference mirroring the PyTorch forward."""
    diff = positive_scores - negative_scores
    return -jnp.log(jax.nn.sigmoid(diff)).mean()


if __name__ == "__main__":
    key = jax.random.PRNGKey(0)
    k1, k2 = jax.random.split(key)
    B, N = 16, 128  # small demo shapes; (8,128)-aligned
    pos = jax.random.normal(k1, (B, N), dtype=jnp.float32)
    neg = jax.random.normal(k2, (B, N), dtype=jnp.float32)

    loss = jax.block_until_ready(bpr_loss(pos, neg))
    ref = jax.block_until_ready(bpr_loss_ref(pos, neg))

    assert jnp.allclose(loss, ref, rtol=1e-5, atol=1e-6), (loss, ref)
    print("KERNEL_OK")
</pallas_src>

<mosaic_0001>
module attributes {stable_mosaic.version = 11 : i64} {
  func.func @_bpr_partial_kernel(%arg0: i32, %arg1: memref<16x128xf32, #tpu.memory_space<vmem>>, %arg2: memref<16x128xf32, #tpu.memory_space<vmem>>, %arg3: memref<1x8x128xf32, #tpu.memory_space<vmem>>) attributes {dimension_semantics = [#tpu.dimension_semantics<parallel>], iteration_bounds = array<i64: 1>, scalar_prefetch = 0 : i64, scratch_operands = 0 : i64, tpu.core_type = #tpu.core_type<tc>, window_params = [{transform_indices = @transform_0, window_bounds = array<i64: 16, 128>}, {transform_indices = @transform_1, window_bounds = array<i64: 16, 128>}, {transform_indices = @transform_2, window_bounds = array<i64: 1, 8, 128>}]} {
    %c0 = arith.constant 0 : index
    %c0_0 = arith.constant 0 : index
    %0 = vector.load %arg1[%c0, %c0_0] : memref<16x128xf32, #tpu.memory_space<vmem>>, vector<16x128xf32>
    %c0_1 = arith.constant 0 : index
    %c0_2 = arith.constant 0 : index
    %1 = vector.load %arg2[%c0_1, %c0_2] : memref<16x128xf32, #tpu.memory_space<vmem>>, vector<16x128xf32>
    %2 = arith.subf %1, %0 : vector<16x128xf32>
    %cst = arith.constant 0.000000e+00 : f32
    %3 = vector.broadcast %cst : f32 to vector<16x128xf32>
    %4 = arith.maximumf %2, %3 : vector<16x128xf32>
    %5 = math.absf %2 : vector<16x128xf32>
    %cst_3 = arith.constant 0.000000e+00 : f32
    %6 = vector.broadcast %cst_3 : f32 to vector<16x128xf32>
    %7 = arith.subf %6, %5 : vector<16x128xf32>
    %8 = math.exp %7 : vector<16x128xf32>
    %cst_4 = arith.constant 1.000000e+00 : f32
    %9 = vector.broadcast %cst_4 : f32 to vector<16x128xf32>
    %10 = arith.addf %9, %8 : vector<16x128xf32>
    %11 = math.log %10 : vector<16x128xf32>
    %12 = arith.addf %4, %11 : vector<16x128xf32>
    %13 = vector.shape_cast %12 : vector<16x128xf32> to vector<2x8x128xf32>
    %cst_5 = arith.constant dense<0.000000e+00> : vector<8x128xf32>
    %14 = vector.multi_reduction <add>, %13, %cst_5 [0] : vector<2x8x128xf32> to vector<8x128xf32>
    %15 = vector.shape_cast %14 : vector<8x128xf32> to vector<1x8x128xf32>
    %c0_6 = arith.constant 0 : index
    %c0_7 = arith.constant 0 : index
    %c0_8 = arith.constant 0 : index
    %16 = vector.load %arg3[%c0_6, %c0_7, %c0_8] : memref<1x8x128xf32, #tpu.memory_space<vmem>>, vector<1x8x128xf32>
    tpu.vector_store %arg3[%c0_6, %c0_7, %c0_8], %15 {strides = array<i32>} : memref<1x8x128xf32, #tpu.memory_space<vmem>>, vector<1x8x128xf32>,
    return
  }
  func.func @transform_0(%arg0: i32) -> (i32, i32) {
    %c0_i32 = arith.constant 0 : i32
    %c0_i32_0 = arith.constant 0 : i32
    return %arg0, %c0_i32 : i32, i32
  }
  func.func @transform_1(%arg0: i32) -> (i32, i32) {
    %c0_i32 = arith.constant 0 : i32
    %c0_i32_0 = arith.constant 0 : i32
    return %arg0, %c0_i32 : i32, i32
  }
  func.func @transform_2(%arg0: i32) -> (i32, i32, i32) {
    %c0_i32 = arith.constant 0 : i32
    %c0_i32_0 = arith.constant 0 : i32
    %c0_i32_1 = arith.constant 0 : i32
    return %arg0, %c0_i32, %c0_i32_0 : i32, i32, i32
  }
}

</mosaic_0001>

<llo_original>
// kernel: tpu_custom_call.1
$region0: #{tpu_custom_call.1}
  #allocation0 [shape = 'u32[]', space=smem, size = 0x4, offset = 0x4, fixed_abs, tag = 'smem constant byte address 0x4 - core index']
  #allocation1 [shape = 'u32[144,128]{1,0:T(1,128)}', space=vmem, size = 0x12000, scoped, tag = 'internal scratch']
  %s0 = inlined_call_operand.hbm [shape: f32[16,128], index: 0, kind: input, shape index: {}]
  %s1 = inlined_call_operand.hbm [shape: f32[16,128], index: 1, kind: input, shape index: {}]
  %s2 = inlined_call_operand.hbm [shape: f32[1,8,128], index: 2, kind: output, shape index: {}]
  %s3 = sld [smem:[#allocation0]]
  $region26: #{tpu_custom_call.1} parent=0
    _
  %s5 = ssub.s32 1, %s3
  %s6 = scalar_select 0, %s5, %s3
  $region1: #{tpu_custom_call.1} parent=0
    #allocation2 [shape = 'u8[8192]{0}', space=vmem, size = 0x2000, scoped, tag = 'input window, operand 0, single buffered']
    #allocation3 [shape = 's32[1]{0}', space=sflag, size = 0x4, scoped, tag = 'scoped memory for tpu_custom_call.1']
    #allocation4 [shape = 's32[1]{0}', space=sflag, size = 0x4, scoped, tag = 'scoped memory for tpu_custom_call.1']
    #allocation5 [shape = 'u8[8192]{0}', space=vmem, size = 0x2000, scoped, tag = 'input window, operand 1, single buffered']
    #allocation6 [shape = 's32[1]{0}', space=sflag, size = 0x4, scoped, tag = 'scoped memory for tpu_custom_call.1']
    #allocation7 [shape = 'u8[4096]{0}', space=vmem, size = 0x1000, scoped, tag = 'output window, operand 0, single buffered']
    %7 = vsyncpa [#allocation3], 0
    %8 = vsyncpa [#allocation6], 0
    %9 = vsyncpa [#allocation4], 0
    // Predicated region
    $region2: #{tpu_custom_call.1} parent=1 // pred_check
      _
    $region3: #{tpu_custom_call.1} parent=1 // pred_check_branch
      %11 = sbr.rel (0) target = $region5
    $region4: #{tpu_custom_call.1} parent=1 // pred_region
      %s13 = ssub.s32 256, 256
      %14 = vsyncadd [#allocation3], %s13
      %s15 = sshll.u32 [#allocation2], 4
      %s16 = int_to_ptr.vmem [resolvable:$true] %s15
      %21 = dma.hbm_to_vmem [thread:$0]  %s0, 256, %s16, [#allocation3], 128, 128, 8
    $region5: #{tpu_custom_call.1} parent=1 // pred_fallthru
      _
    // Predicated region
    $region6: #{tpu_custom_call.1} parent=1 // pred_check
      _
    $region7: #{tpu_custom_call.1} parent=1 // pred_check_branch
      %23 = sbr.rel (0) target = $region9
    $region8: #{tpu_custom_call.1} parent=1 // pred_region
      %s25 = ssub.s32 256, 256
      %26 = vsyncadd [#allocation6], %s25
      %s27 = sshll.u32 [#allocation5], 4
      %s28 = int_to_ptr.vmem [resolvable:$true] %s27
      %33 = dma.hbm_to_vmem [thread:$0]  %s1, 256, %s28, [#allocation6], 128, 128, 8
    $region9: #{tpu_custom_call.1} parent=1 // pred_fallthru
      _
    // Predicated region
    $region10: #{tpu_custom_call.1} parent=1 // pred_check
      _
    $region11: #{tpu_custom_call.1} parent=1 // pred_check_branch
      %35 = sbr.rel (0) target = $region13
    $region12: #{tpu_custom_call.1} parent=1 // pred_region
      %36 = dma.done [#allocation3], 256
    $region13: #{tpu_custom_call.1} parent=1 // pred_fallthru
      _
    // Predicated region
    $region14: #{tpu_custom_call.1} parent=1 // pred_check
      _
    $region15: #{tpu_custom_call.1} parent=1 // pred_check_branch
      %38 = sbr.rel (0) target = $region17
    $region16: #{tpu_custom_call.1} parent=1 // pred_region
      %39 = dma.done [#allocation6], 256
    $region17: #{tpu_custom_call.1} parent=1 // pred_fallthru
      _
    %v40 = vld [vmem:[#allocation2] sm:$0xff]
    %v41 = vld [vmem:[#allocation2 + $0x8] sm:$0xff]
    %v42 = vld [vmem:[#allocation5] sm:$0xff]
    %v43 = vld [vmem:[#allocation5 + $0x8] sm:$0xff]
    %v44 = vsub.f32 %v42, %v40
    %v45 = vsub.f32 %v43, %v41
    %v46 = vmax.f32 %v44, 0.0
    %v47 = vmax.f32 %v45, 0.0
    %v48 = vand.u32 2147483647, %v44
    %v49 = vand.u32 2147483647, %v45
    %v50 = vsub.f32 0.0, %v48
    %v51 = vsub.f32 0.0, %v49
    %v52 = vmul.f32 %v50, 1.442695
    %v53 = vpow.pop %v52
    %v54 = vmul.f32 %v51, 1.442695
    %v55 = vpow.pop %v54
    %v56 = vadd.f32 %v53, 1.0
    %v57 = vadd.f32 %v55, 1.0
    %v58 = vlog2.pop %v56
    %v59 = vmul.f32 %v58, 0.6931472
    %v60 = vlog2.pop %v57
    %v61 = vmul.f32 %v60, 0.6931472
    %v62 = vadd.f32 %v46, %v59
    %v63 = vadd.f32 %v47, %v61
    %v64 = vadd.f32 %v62, %v63
    %65 = vst [vmem:[#allocation7] sm:$0xff] %v64
    // Predicated region
    $region18: #{tpu_custom_call.1} parent=1 // pred_check
      _
    $region19: #{tpu_custom_call.1} parent=1 // pred_check_branch
      %67 = sbr.rel (0) target = $region21
    $region20: #{tpu_custom_call.1} parent=1 // pred_region
      %s69 = ssub.s32 128, 128
      %70 = vsyncadd [#allocation4], %s69
      %s72 = sshll.u32 [#allocation7], 4
      %s73 = int_to_ptr.vmem [resolvable:$true] %s72
      %75 = dma.vmem_to_hbm [thread:$0]  %s73, 128, %s2, [#allocation4]
    $region21: #{tpu_custom_call.1} parent=1 // pred_fallthru
      _
    // Predicated region
    $region22: #{tpu_custom_call.1} parent=1 // pred_check
      _
    $region23: #{tpu_custom_call.1} parent=1 // pred_check_branch
      %77 = sbr.rel (0) target = $region25
    $region24: #{tpu_custom_call.1} parent=1 // pred_region
      %78 = dma.done [#allocation4], 128
    $region25: #{tpu_custom_call.1} parent=1 // pred_fallthru
      _
    %79 = vsyncpa [#allocation3], 1
    %80 = vsyncpa [#allocation6], 1
    %81 = vsyncpa [#allocation4], 1

</llo_original>
